<compile_context>
chip_gen: v6e
topology: v6e:2x2x1
jax: 0.10.0
libtpu: 0.0.40
codegen_flags: <defaults>
</compile_context>

<pallas_src>
import math

import jax
import jax.numpy as jnp
import numpy as np
from jax.experimental import pallas as pl
from jax.experimental.pallas import tpu as pltpu

LANE = 128
KSIZE = 3
EPS = 1e-5


# ----------------------------------------------------------------------------- kernel
def resblock_kernel(x_ref, w1d_ref, b1_ref, w2_ref, b2d_ref, o_ref):
    # x_ref  : (1, H, W*Cin_p)            lane-packed input (lane = w*Cin_p + ci), f32
    # w1d_ref: (3*W*Cin_p, 2*W*Cout_p)    [conv1 | 1x1-downsample] block-Toeplitz weights
    #                                     (BN scales pre-folded), f32 or bf16
    # b1_ref : (1, W*Cout_p)              folded BN1 bias (packed per (w, co)), f32
    # w2_ref : (3*W*Cout_p, W*Cout_p)     conv2 block-Toeplitz weights (BN2 scale folded)
    # b2d_ref: (1, W*Cout_p)              BN2 bias + downsample-BN bias, packed, f32
    # o_ref  : (1, H, W*Cout_p)           lane-packed output, f32
    H = o_ref.shape[1]
    wcout = o_ref.shape[2]                     # W * Cout_p, multiple of 128

    # Exact 0/1 row-shift matrices: (s_dn @ v)[i] = v[i-1] (zero row 0),
    #                               (s_up @ v)[i] = v[i+1] (zero last row).
    r = jax.lax.broadcasted_iota(jnp.int32, (H, H), 0)
    c = jax.lax.broadcasted_iota(jnp.int32, (H, H), 1)
    s_dn = (r == c + 1).astype(jnp.float32)
    s_up = (c == r + 1).astype(jnp.float32)

    def row_taps(v):
        # v: (H, L) f32  ->  (H, 3L) = [v[i-1] | v[i] | v[i+1]]  (zero-padded at edges).
        dn = jnp.dot(s_dn, v, preferred_element_type=jnp.float32)
        up = jnp.dot(s_up, v, preferred_element_type=jnp.float32)
        return jnp.concatenate([dn, v, up], axis=-1)   # lane-aligned concat (L % 128 == 0)

    cdt = w1d_ref.dtype                         # matmul operand dtype (f32 or bf16)

    x = x_ref[0]                                # (H, W*Cin_p), f32
    p1 = row_taps(x)                            # (H, 3*W*Cin_p)

    # conv1 (+ fused 1x1 downsample) as a single MXU matmul, f32 accumulation.
    y = jnp.dot(p1.astype(cdt), w1d_ref[...], preferred_element_type=jnp.float32)
    h1 = jnp.maximum(y[:, :wcout] + b1_ref[...], 0.0)    # BN1 bias + ReLU   (f32 VPU)
    ds = y[:, wcout:]                                    # downsample path (BN scale folded)

    p2 = row_taps(h1)                           # (H, 3*W*Cout_p)
    main = jnp.dot(p2.astype(cdt), w2_ref[...], preferred_element_type=jnp.float32)

    o_ref[0] = main + ds + b2d_ref[...]         # BN2 bias + downsample-BN bias; no final ReLU


# ------------------------------------------------------------------- weight packing
def _pad_channels(c, w):
    """Smallest c_p >= c such that w * c_p is a multiple of the 128-lane width."""
    step = LANE // math.gcd(w, LANE)
    return ((c + step - 1) // step) * step


def _pack_conv3x3(w_hwio, scale, W, cin_p, cout_p):
    """(3,3,cin,cout) conv weight, BN scale folded -> block-Toeplitz (3*W*cin_p, W*cout_p)."""
    k, _, cin, cout = w_hwio.shape
    ws = np.asarray(w_hwio, np.float32) * np.asarray(scale, np.float32).reshape(1, 1, 1, cout)
    big = np.zeros((k, W, cin_p, W, cout_p), np.float32)
    for dw in range(k):
        for w in range(W):
            wi = w + dw - 1                      # input column feeding output column w
            if 0 <= wi < W:
                big[:, wi, :cin, w, :cout] = ws[:, dw]
    return big.reshape(k * W * cin_p, W * cout_p)


def _pack_conv1x1(wd, scale, W, cin_p, cout_p):
    """(cin,cout) 1x1 conv weight, BN scale folded -> block-diagonal (W*cin_p, W*cout_p)."""
    cin, cout = wd.shape
    ws = np.asarray(wd, np.float32) * np.asarray(scale, np.float32).reshape(1, cout)
    big = np.zeros((W, cin_p, W, cout_p), np.float32)
    for w in range(W):
        big[w, :cin, w, :cout] = ws
    return big.reshape(W * cin_p, W * cout_p)


def _pack_bias(b, W, cout_p):
    b = np.asarray(b, np.float32).ravel()
    bp = np.zeros((cout_p,), np.float32)
    bp[:b.size] = b
    return np.tile(bp, W).reshape(1, W * cout_p)


def pack_params(params, W, compute_dtype=jnp.float32):
    """Fold BN scales into block-Toeplitz weights for the lane-packed (H, W*C) layout."""
    cin, cout = params["wd"].shape
    cin_p, cout_p = _pad_channels(cin, W), _pad_channels(cout, W)

    w1_big = _pack_conv3x3(params["w1"], params["s1"], W, cin_p, cout_p)
    wd_big = np.zeros_like(w1_big)               # downsample only taps the centre (dh=1) row
    wd_big[W * cin_p:2 * W * cin_p, :] = _pack_conv1x1(params["wd"], params["sd"],
                                                       W, cin_p, cout_p)
    w1d = np.concatenate([w1_big, wd_big], axis=1)          # (3*W*cin_p, 2*W*cout_p)
    w2 = _pack_conv3x3(params["w2"], params["s2"], W, cout_p, cout_p)

    b1 = _pack_bias(params["b1"], W, cout_p)
    b2d = _pack_bias(np.asarray(params["b2"], np.float32).ravel()
                     + np.asarray(params["bd"], np.float32).ravel(), W, cout_p)

    return dict(
        w1d=jnp.asarray(w1d, compute_dtype),
        w2=jnp.asarray(w2, compute_dtype),
        b1=jnp.asarray(b1, jnp.float32),
        b2d=jnp.asarray(b2d, jnp.float32),
        cin_p=cin_p, cout_p=cout_p, cout=cout)


# ------------------------------------------------------------------------ wrapper
def resblock_forward(x_nchw, packed):
    """x_nchw: (N, Cin, H, W) float32 -> (N, Cout, H, W) float32."""
    N, Cin, H, W = x_nchw.shape
    cin_p, cout_p, cout = packed["cin_p"], packed["cout_p"], packed["cout"]

    # NCHW -> lane-packed (N, H, W*cin_p); pad channels so the lane dim is 128-dense.
    x = jnp.transpose(x_nchw, (0, 2, 3, 1))                  # (N, H, W, Cin)
    if cin_p != Cin:
        x = jnp.pad(x, ((0, 0), (0, 0), (0, 0), (0, cin_p - Cin)))
    x_pk = x.reshape(N, H, W * cin_p).astype(jnp.float32)

    wcin, wcout = W * cin_p, W * cout_p
    out_pk = pl.pallas_call(
        resblock_kernel,
        out_shape=jax.ShapeDtypeStruct((N, H, wcout), jnp.float32),
        grid_spec=pltpu.PrefetchScalarGridSpec(
            num_scalar_prefetch=0,
            grid=(N,),
            in_specs=[
                pl.BlockSpec((1, H, wcin), lambda n: (n, 0, 0)),
                # constant block index -> weights/biases stay resident in VMEM
                pl.BlockSpec((KSIZE * wcin, 2 * wcout), lambda n: (0, 0)),
                pl.BlockSpec((1, wcout), lambda n: (0, 0)),
                pl.BlockSpec((KSIZE * wcout, wcout), lambda n: (0, 0)),
                pl.BlockSpec((1, wcout), lambda n: (0, 0)),
            ],
            out_specs=pl.BlockSpec((1, H, wcout), lambda n: (n, 0, 0)),
        ),
        compiler_params=pltpu.CompilerParams(
            dimension_semantics=("parallel",)),
    )(x_pk, packed["w1d"], packed["b1"], packed["w2"], packed["b2d"])

    out = out_pk.reshape(N, H, W, cout_p)[..., :cout]        # un-pack lanes, drop pad chans
    return jnp.transpose(out, (0, 3, 1, 2))                  # NHWC -> NCHW


# --------------------------------------------------------------- params & reference
def folded_bn(c, offset):
    """Deterministic BatchNorm params folded into a (scale, bias) pair (inference mode)."""
    idx = jnp.arange(c, dtype=jnp.float32) + offset
    gamma = 1.0 + 0.05 * idx
    beta = 0.01 * idx
    mean = 0.02 * idx
    var = 1.0 + 0.03 * idx
    scale = gamma / jnp.sqrt(var + EPS)
    bias = beta - mean * scale
    return scale.reshape(1, c), bias.reshape(1, c)


def make_params(in_c, out_c):
    key = jax.random.PRNGKey(0)
    k1, k2, k3 = jax.random.split(key, 3)
    w1 = 0.1 * jax.random.normal(k1, (KSIZE, KSIZE, in_c, out_c), jnp.float32)
    w2 = 0.1 * jax.random.normal(k2, (KSIZE, KSIZE, out_c, out_c), jnp.float32)
    wd = 0.1 * jax.random.normal(k3, (in_c, out_c), jnp.float32)
    s1, b1 = folded_bn(out_c, 0.0)
    s2, b2 = folded_bn(out_c, 1.0)
    sd, bd = folded_bn(out_c, 2.0)
    return dict(w1=w1, s1=s1, b1=b1, w2=w2, s2=s2, b2=b2, wd=wd, sd=sd, bd=bd)


def ref_resblock(x_nchw, p):
    """Plain-JAX reference (same inference-mode BN folding, full f32 precision)."""
    x = jnp.transpose(x_nchw, (0, 2, 3, 1))
    cin, cout = p["wd"].shape

    def conv(inp, w, pad):
        return jax.lax.conv_general_dilated(
            inp, w, (1, 1), pad, dimension_numbers=("NHWC", "HWIO", "NHWC"),
            precision=jax.lax.Precision.HIGHEST)

    h = conv(x, p["w1"], ((1, 1), (1, 1)))
    h = h * p["s1"].reshape(1, 1, 1, -1) + p["b1"].reshape(1, 1, 1, -1)
    h = jnp.maximum(h, 0.0)
    h = conv(h, p["w2"], ((1, 1), (1, 1)))
    h = h * p["s2"].reshape(1, 1, 1, -1) + p["b2"].reshape(1, 1, 1, -1)
    ds = conv(x, p["wd"].reshape(1, 1, cin, cout), ((0, 0), (0, 0)))
    ds = ds * p["sd"].reshape(1, 1, 1, -1) + p["bd"].reshape(1, 1, 1, -1)
    return jnp.transpose(h + ds, (0, 3, 1, 2))


# -------------------------------------------------------------------------- main
if __name__ == "__main__":
    N, IN_C, OUT_C, H, W = 2, 4, 8, 16, 16
    params = make_params(IN_C, OUT_C)
    x = jax.random.normal(jax.random.PRNGKey(0), (N, IN_C, H, W), jnp.float32)

    ref = jax.block_until_ready(ref_resblock(x, params))

    # f32 matmul operands: tight check against the f32 reference.
    packed_f32 = pack_params(params, W, jnp.float32)
    out = jax.block_until_ready(resblock_forward(x, packed_f32))
    assert out.shape == (N, OUT_C, H, W)
    assert jnp.max(jnp.abs(out - ref)) < 1e-4, "f32 kernel mismatch vs JAX reference"

    # bf16 matmul operands (v6e/v7x MXU path), f32 accumulation + f32 elementwise math.
    packed_bf16 = pack_params(params, W, jnp.bfloat16)
    out_bf16 = jax.block_until_ready(resblock_forward(x, packed_bf16))
    assert out_bf16.shape == (N, OUT_C, H, W)
    assert jnp.max(jnp.abs(out_bf16 - ref)) < 0.25, "bf16 kernel mismatch vs JAX reference"

    print("KERNEL_OK")
</pallas_src>

<mosaic_0001>
module attributes {stable_mosaic.version = 11 : i64} {
  func.func @resblock_kernel(%arg0: i32, %arg1: memref<1x16x128xf32, #tpu.memory_space<vmem>>, %arg2: memref<384x256xf32, #tpu.memory_space<vmem>>, %arg3: memref<1x128xf32, #tpu.memory_space<vmem>>, %arg4: memref<384x128xf32, #tpu.memory_space<vmem>>, %arg5: memref<1x128xf32, #tpu.memory_space<vmem>>, %arg6: memref<1x16x128xf32, #tpu.memory_space<vmem>>) attributes {dimension_semantics = [#tpu.dimension_semantics<parallel>], iteration_bounds = array<i64: 2>, scalar_prefetch = 0 : i64, scratch_operands = 0 : i64, tpu.core_type = #tpu.core_type<tc>, window_params = [{transform_indices = @transform_0, window_bounds = array<i64: 1, 16, 128>}, {pipeline_mode = #tpu.pipeline_mode<synchronous>, transform_indices = @transform_1, window_bounds = array<i64: 384, 256>}, {pipeline_mode = #tpu.pipeline_mode<synchronous>, transform_indices = @transform_2, window_bounds = array<i64: 1, 128>}, {pipeline_mode = #tpu.pipeline_mode<synchronous>, transform_indices = @transform_3, window_bounds = array<i64: 384, 128>}, {pipeline_mode = #tpu.pipeline_mode<synchronous>, transform_indices = @transform_4, window_bounds = array<i64: 1, 128>}, {transform_indices = @transform_5, window_bounds = array<i64: 1, 16, 128>}]} {
    %0 = tpu.iota {dimensions = array<i32: 0>} : vector<16x16xi32>
    %1 = tpu.iota {dimensions = array<i32: 1>} : vector<16x16xi32>
    %c1_i32 = arith.constant 1 : i32
    %2 = vector.broadcast %c1_i32 : i32 to vector<16x16xi32>
    %3 = arith.addi %1, %2 : vector<16x16xi32>
    %4 = arith.cmpi eq, %0, %3 : vector<16x16xi32>
    %5 = arith.extui %4 : vector<16x16xi1> to vector<16x16xi32>
    %6 = arith.sitofp %5 : vector<16x16xi32> to vector<16x16xf32>
    %c1_i32_0 = arith.constant 1 : i32
    %7 = vector.broadcast %c1_i32_0 : i32 to vector<16x16xi32>
    %8 = arith.addi %0, %7 : vector<16x16xi32>
    %9 = arith.cmpi eq, %1, %8 : vector<16x16xi32>
    %10 = arith.extui %9 : vector<16x16xi1> to vector<16x16xi32>
    %11 = arith.sitofp %10 : vector<16x16xi32> to vector<16x16xf32>
    %c0 = arith.constant 0 : index
    %c0_1 = arith.constant 0 : index
    %c0_2 = arith.constant 0 : index
    %12 = vector.load %arg1[%c0, %c0_1, %c0_2] : memref<1x16x128xf32, #tpu.memory_space<vmem>>, vector<1x16x128xf32>
    %13 = vector.shape_cast %12 : vector<1x16x128xf32> to vector<16x128xf32>
    %cst = arith.constant dense<0.000000e+00> : vector<16x128xf32>
    %14 = tpu.matmul %6, %13, %cst {dimension_numbers = #tpu.dot_dimension_numbers<[1], [0], [0], [1], [0, 0, 1, 1], [], []>} : vector<16x16xf32>, vector<16x128xf32>, vector<16x128xf32> -> vector<16x128xf32>
    %cst_3 = arith.constant dense<0.000000e+00> : vector<16x128xf32>
    %15 = tpu.matmul %11, %13, %cst_3 {dimension_numbers = #tpu.dot_dimension_numbers<[1], [0], [0], [1], [0, 0, 1, 1], [], []>} : vector<16x16xf32>, vector<16x128xf32>, vector<16x128xf32> -> vector<16x128xf32>
    %16 = tpu.concatenate %14, %13, %15 in 1 : vector<16x128xf32>, vector<16x128xf32>, vector<16x128xf32> -> vector<16x384xf32>
    %c0_4 = arith.constant 0 : index
    %c0_5 = arith.constant 0 : index
    %17 = vector.load %arg2[%c0_4, %c0_5] : memref<384x256xf32, #tpu.memory_space<vmem>>, vector<384x256xf32>
    %cst_6 = arith.constant dense<0.000000e+00> : vector<16x256xf32>
    %18 = tpu.matmul %16, %17, %cst_6 {dimension_numbers = #tpu.dot_dimension_numbers<[1], [0], [0], [1], [0, 0, 1, 1], [], []>} : vector<16x384xf32>, vector<384x256xf32>, vector<16x256xf32> -> vector<16x256xf32>
    %19 = vector.extract_strided_slice %18 {offsets = [0, 0], sizes = [16, 128], strides = [1, 1]} : vector<16x256xf32> to vector<16x128xf32>
    %c0_7 = arith.constant 0 : index
    %c0_8 = arith.constant 0 : index
    %20 = vector.load %arg3[%c0_7, %c0_8] : memref<1x128xf32, #tpu.memory_space<vmem>>, vector<1x128xf32>
    %21 = vector.broadcast %20 : vector<1x128xf32> to vector<16x128xf32>
    %22 = arith.addf %19, %21 : vector<16x128xf32>
    %cst_9 = arith.constant 0.000000e+00 : f32
    %23 = vector.broadcast %cst_9 : f32 to vector<16x128xf32>
    %24 = arith.maximumf %22, %23 : vector<16x128xf32>
    %25 = vector.extract_strided_slice %18 {offsets = [0, 128], sizes = [16, 128], strides = [1, 1]} : vector<16x256xf32> to vector<16x128xf32>
    %cst_10 = arith.constant dense<0.000000e+00> : vector<16x128xf32>
    %26 = tpu.matmul %6, %24, %cst_10 {dimension_numbers = #tpu.dot_dimension_numbers<[1], [0], [0], [1], [0, 0, 1, 1], [], []>} : vector<16x16xf32>, vector<16x128xf32>, vector<16x128xf32> -> vector<16x128xf32>
    %cst_11 = arith.constant dense<0.000000e+00> : vector<16x128xf32>
    %27 = tpu.matmul %11, %24, %cst_11 {dimension_numbers = #tpu.dot_dimension_numbers<[1], [0], [0], [1], [0, 0, 1, 1], [], []>} : vector<16x16xf32>, vector<16x128xf32>, vector<16x128xf32> -> vector<16x128xf32>
    %28 = tpu.concatenate %26, %24, %27 in 1 : vector<16x128xf32>, vector<16x128xf32>, vector<16x128xf32> -> vector<16x384xf32>
    %c0_12 = arith.constant 0 : index
    %c0_13 = arith.constant 0 : index
    %29 = vector.load %arg4[%c0_12, %c0_13] : memref<384x128xf32, #tpu.memory_space<vmem>>, vector<384x128xf32>
    %cst_14 = arith.constant dense<0.000000e+00> : vector<16x128xf32>
    %30 = tpu.matmul %28, %29, %cst_14 {dimension_numbers = #tpu.dot_dimension_numbers<[1], [0], [0], [1], [0, 0, 1, 1], [], []>} : vector<16x384xf32>, vector<384x128xf32>, vector<16x128xf32> -> vector<16x128xf32>
    %31 = arith.addf %30, %25 : vector<16x128xf32>
    %c0_15 = arith.constant 0 : index
    %c0_16 = arith.constant 0 : index
    %32 = vector.load %arg5[%c0_15, %c0_16] : memref<1x128xf32, #tpu.memory_space<vmem>>, vector<1x128xf32>
    %33 = vector.broadcast %32 : vector<1x128xf32> to vector<16x128xf32>
    %34 = arith.addf %31, %33 : vector<16x128xf32>
    %c0_17 = arith.constant 0 : index
    %c0_18 = arith.constant 0 : index
    %c0_19 = arith.constant 0 : index
    %35 = vector.load %arg6[%c0_17, %c0_18, %c0_19] : memref<1x16x128xf32, #tpu.memory_space<vmem>>, vector<1x16x128xf32>
    %36 = vector.shape_cast %35 : vector<1x16x128xf32> to vector<16x128xf32>
    %37 = vector.shape_cast %34 : vector<16x128xf32> to vector<1x16x128xf32>
    tpu.vector_store %arg6[%c0_17, %c0_18, %c0_19], %37 {strides = array<i32>} : memref<1x16x128xf32, #tpu.memory_space<vmem>>, vector<1x16x128xf32>,
    return
  }
  func.func @transform_0(%arg0: i32) -> (i32, i32, i32) {
    %c0_i32 = arith.constant 0 : i32
    %c0_i32_0 = arith.constant 0 : i32
    %c0_i32_1 = arith.constant 0 : i32
    return %arg0, %c0_i32, %c0_i32_0 : i32, i32, i32
  }
  func.func @transform_1(%arg0: i32) -> (i32, i32) {
    %c0_i32 = arith.constant 0 : i32
    %c0_i32_0 = arith.constant 0 : i32
    %c0_i32_1 = arith.constant 0 : i32
    return %c0_i32, %c0_i32_0 : i32, i32
  }
  func.func @transform_2(%arg0: i32) -> (i32, i32) {
    %c0_i32 = arith.constant 0 : i32
    %c0_i32_0 = arith.constant 0 : i32
    %c0_i32_1 = arith.constant 0 : i32
    return %c0_i32, %c0_i32_0 : i32, i32
  }
  func.func @transform_3(%arg0: i32) -> (i32, i32) {
    %c0_i32 = arith.constant 0 : i32
    %c0_i32_0 = arith.constant 0 : i32
    %c0_i32_1 = arith.constant 0 : i32
    return %c0_i32, %c0_i32_0 : i32, i32
  }
  func.func @transform_4(%arg0: i32) -> (i32, i32) {
    %c0_i32 = arith.constant 0 : i32
    %c0_i32_0 = arith.constant 0 : i32
    %c0_i32_1 = arith.constant 0 : i32
    return %c0_i32, %c0_i32_0 : i32, i32
  }
  func.func @transform_5(%arg0: i32) -> (i32, i32, i32) {
    %c0_i32 = arith.constant 0 : i32
    %c0_i32_0 = arith.constant 0 : i32
    %c0_i32_1 = arith.constant 0 : i32
    return %arg0, %c0_i32, %c0_i32_0 : i32, i32, i32
  }
}

</mosaic_0001>

<llo_original>
// kernel: tpu_custom_call.1
$region0: #{tpu_custom_call.1}
  #allocation0 [shape = 'u32[]', space=smem, size = 0x4, offset = 0x4, fixed_abs, tag = 'smem constant byte address 0x4 - core index']
  #allocation1 [shape = 'u32[144,128]{1,0:T(1,128)}', space=vmem, size = 0x12000, scoped, tag = 'internal scratch']
  %s0 = inlined_call_operand.hbm [shape: f32[2,16,128], index: 0, kind: input, shape index: {}]
  %s1 = inlined_call_operand.hbm [shape: f32[384,256], index: 1, kind: input, shape index: {}]
  %s2 = inlined_call_operand.vmem [shape: f32[1,128], index: 2, kind: input, shape index: {}]
  %s3 = inlined_call_operand.hbm [shape: f32[384,128], index: 3, kind: input, shape index: {}]
  %s4 = inlined_call_operand.vmem [shape: f32[1,128], index: 4, kind: input, shape index: {}]
  %s5 = inlined_call_operand.hbm [shape: f32[2,16,128], index: 5, kind: output, shape index: {}]
  %s6 = sld [smem:[#allocation0]]
  $region65: #{tpu_custom_call.1} parent=0
    _
  %s8 = ssub.s32 1, %s6
  %s9 = scalar_select 0, %s8, %s6
  $region1: #{tpu_custom_call.1} parent=0
    #allocation2 [shape = 'u8[16384]{0}', space=vmem, size = 0x4000, scoped, tag = 'input window, operand 0']
    #allocation3 [shape = 's32[2]{0}', space=sflag, size = 0x8, scoped, tag = 'scoped memory for tpu_custom_call.1']
    #allocation4 [shape = 's32[2]{0}', space=sflag, size = 0x8, scoped, tag = 'scoped memory for tpu_custom_call.1']
    #allocation5 [shape = 'u8[393216]{0}', space=vmem, size = 0x60000, scoped, tag = 'input window, operand 1, single buffered']
    #allocation6 [shape = 's32[1]{0}', space=sflag, size = 0x4, scoped, tag = 'scoped memory for tpu_custom_call.1']
    #allocation7 [shape = 'u8[196608]{0}', space=vmem, size = 0x30000, scoped, tag = 'input window, operand 3, single buffered']
    #allocation8 [shape = 'u8[16384]{0}', space=vmem, size = 0x4000, scoped, tag = 'output window, operand 0']
    %10 = vsyncpa [#allocation3], 0
    %s11 = scalar_lea.sflag [#allocation3], 1
    %12 = vsyncpa %s11, 0
    %13 = vsyncpa [#allocation6], 0
    %14 = vsyncpa [#allocation4], 0
    %s15 = scalar_lea.sflag [#allocation4], 1
    %16 = vsyncpa %s15, 0
    loop: start=0, step=1, limit=4
    $region2: #{tpu_custom_call.1} parent=1 // loop_pre_header
      _
    $region3: #{tpu_custom_call.1} parent=1 // loop_header
      %s18 = sphi 0, %s22
      %p19 = scmp.ge.s32.totalorder %s18, 4
      %s28 = sphi 0, %s30
      %s31 = sphi 0, %s28
      %s32 = sphi 0, %s31
      %s48 = sphi 0, %s32
      %s52 = sphi 0, %s52
      %s54 = sphi 0, %s52
      %s55 = sphi 0, %s54
      %s69 = sphi 0, %s55
      %s73 = sphi 0, %s73
      %s75 = sphi 0, %s73
      %s76 = sphi 0, %s75
      %s90 = sphi 0, %s76
      %s94 = sphi 0, %s94
      %s96 = sphi 0, %s94
      %s97 = sphi 0, %s96
      %s111 = sphi 0, %s97
      %s115 = sphi 0, %s115
      %s117 = sphi 0, %s115
      %s118 = sphi 0, %s117
      %s132 = sphi 0, %s118
      %s138 = sphi 0, %s140
      %s141 = sphi 0, %s138
      %s142 = sphi 0, %s141
      %s158 = sphi 0, %s142
    $region4: #{tpu_custom_call.1} parent=1 // loop_header_branch
      %21 = sbr.rel (%p19) target = $region8
    $region5: #{tpu_custom_call.1} parent=1 // loop_body
      %s23 = ssub.s32 %s18, 1
      %s24 = ssub.s32 %s18, 2
      %s25 = sadd.s32 %s18, 1
      %s26 = ssub.s32 %s18, %s25
      %p27 = scmp.eq.s32.totalorder %s26, 0
      %s29 = sadd.s32 %s28, 1
      %s30 = scalar_select %p27, %s28, %s29
      %p33 = pneg %p27
      %p34 = scmp.eq.s32.totalorder %s18, 1
      %p35 = por %p33, %p34
      %p36 = scmp.ne.s32.totalorder %s28, %s31
      %p37 = scmp.eq.s32.totalorder %s18, 0
      %p38 = por %p36, %p37
      %p39 = scmp.ne.s32.totalorder %s28, %s31
      %p40 = scmp.eq.s32.totalorder %s23, 1
      %p41 = por %p39, %p40
      %p42 = scmp.ne.s32.totalorder %s31, %s32
      %p43 = scmp.eq.s32.totalorder %s23, 0
      %p44 = por %p42, %p43
      %p45 = scmp.ne.s32.totalorder %s31, %s32
      %p46 = scmp.eq.s32.totalorder %s24, 1
      %p47 = por %p45, %p46
      %p49 = scmp.ne.s32.totalorder %s32, %s48
      %p50 = scmp.eq.s32.totalorder %s24, 0
      %p51 = por %p49, %p50
      %s53 = sadd.s32 %s52, 1
      %p56 = scmp.eq.s32.totalorder %s18, 1
      %p57 = scmp.ne.s32.totalorder %s52, %s54
      %p58 = scmp.eq.s32.totalorder %s18, 0
      %p59 = por %p57, %p58
      %p60 = scmp.ne.s32.totalorder %s52, %s54
      %p61 = scmp.eq.s32.totalorder %s23, 1
      %p62 = por %p60, %p61
      %p63 = scmp.ne.s32.totalorder %s54, %s55
      %p64 = scmp.eq.s32.totalorder %s23, 0
      %p65 = por %p63, %p64
      %p66 = scmp.ne.s32.totalorder %s54, %s55
      %p67 = scmp.eq.s32.totalorder %s24, 1
      %p68 = por %p66, %p67
      %p70 = scmp.ne.s32.totalorder %s55, %s69
      %p71 = scmp.eq.s32.totalorder %s24, 0
      %p72 = por %p70, %p71
      %s74 = sadd.s32 %s73, 1
      %p77 = scmp.eq.s32.totalorder %s18, 1
      %p78 = scmp.ne.s32.totalorder %s73, %s75
      %p79 = scmp.eq.s32.totalorder %s18, 0
      %p80 = por %p78, %p79
      %p81 = scmp.ne.s32.totalorder %s73, %s75
      %p82 = scmp.eq.s32.totalorder %s23, 1
      %p83 = por %p81, %p82
      %p84 = scmp.ne.s32.totalorder %s75, %s76
      %p85 = scmp.eq.s32.totalorder %s23, 0
      %p86 = por %p84, %p85
      %p87 = scmp.ne.s32.totalorder %s75, %s76
      %p88 = scmp.eq.s32.totalorder %s24, 1
      %p89 = por %p87, %p88
      %p91 = scmp.ne.s32.totalorder %s76, %s90
      %p92 = scmp.eq.s32.totalorder %s24, 0
      %p93 = por %p91, %p92
      %s95 = sadd.s32 %s94, 1
      %p98 = scmp.eq.s32.totalorder %s18, 1
      %p99 = scmp.ne.s32.totalorder %s94, %s96
      %p100 = scmp.eq.s32.totalorder %s18, 0
      %p101 = por %p99, %p100
      %p102 = scmp.ne.s32.totalorder %s94, %s96
      %p103 = scmp.eq.s32.totalorder %s23, 1
      %p104 = por %p102, %p103
      %p105 = scmp.ne.s32.totalorder %s96, %s97
      %p106 = scmp.eq.s32.totalorder %s23, 0
      %p107 = por %p105, %p106
      %p108 = scmp.ne.s32.totalorder %s96, %s97
      %p109 = scmp.eq.s32.totalorder %s24, 1
      %p110 = por %p108, %p109
      %p112 = scmp.ne.s32.totalorder %s97, %s111
      %p113 = scmp.eq.s32.totalorder %s24, 0
      %p114 = por %p112, %p113
      %s116 = sadd.s32 %s115, 1
      %p119 = scmp.eq.s32.totalorder %s18, 1
      %p120 = scmp.ne.s32.totalorder %s115, %s117
      %p121 = scmp.eq.s32.totalorder %s18, 0
      %p122 = por %p120, %p121
      %p123 = scmp.ne.s32.totalorder %s115, %s117
      %p124 = scmp.eq.s32.totalorder %s23, 1
      %p125 = por %p123, %p124
      %p126 = scmp.ne.s32.totalorder %s117, %s118
      %p127 = scmp.eq.s32.totalorder %s23, 0
      %p128 = por %p126, %p127
      %p129 = scmp.ne.s32.totalorder %s117, %s118
      %p130 = scmp.eq.s32.totalorder %s24, 1
      %p131 = por %p129, %p130
      %p133 = scmp.ne.s32.totalorder %s118, %s132
      %p134 = scmp.eq.s32.totalorder %s24, 0
      %p135 = por %p133, %p134
      %s136 = ssub.s32 %s18, %s25
      %p137 = scmp.eq.s32.totalorder %s136, 0
      %s139 = sadd.s32 %s138, 1
      %s140 = scalar_select %p137, %s138, %s139
      %p143 = pneg %p137
      %p144 = scmp.eq.s32.totalorder %s18, 1
      %p145 = por %p143, %p144
      %p146 = scmp.ne.s32.totalorder %s138, %s141
      %p147 = scmp.eq.s32.totalorder %s18, 0
      %p148 = por %p146, %p147
      %p149 = scmp.ne.s32.totalorder %s138, %s141
      %p150 = scmp.eq.s32.totalorder %s23, 1
      %p151 = por %p149, %p150
      %p152 = scmp.ne.s32.totalorder %s141, %s142
      %p153 = scmp.eq.s32.totalorder %s23, 0
      %p154 = por %p152, %p153
      %p155 = scmp.ne.s32.totalorder %s141, %s142
      %p156 = scmp.eq.s32.totalorder %s24, 1
      %p157 = por %p155, %p156
      %p159 = scmp.ne.s32.totalorder %s142, %s158
      %p160 = scmp.eq.s32.totalorder %s24, 0
      %p161 = por %p159, %p160
      %p162 = scmp.le.s32.totalorder 1, %s18
      %p163 = scmp.lt.s32.totalorder %s18, 3
      %p164 = pnand %p162, %p163
      %p165 = pneg %p164
      // Predicated region
      $region9: #{tpu_custom_call.1} parent=5 // pred_check
        _
      $region10: #{tpu_custom_call.1} parent=5 // pred_check_branch
        %167 = sbr.rel (%p164) target = $region12
      $region11: #{tpu_custom_call.1} parent=5 // pred_region
        %s168 = ssub.s32 %s18, 1
        // Predicated region
        $region13: #{tpu_custom_call.1} parent=11 // pred_check
          %p169 = pneg %p65
        $region14: #{tpu_custom_call.1} parent=11 // pred_check_branch
          %171 = sbr.rel (%p169) target = $region16
        $region15: #{tpu_custom_call.1} parent=11 // pred_region
          %s173 = ssub.s32 12288, 12288
          %174 = vsyncadd [#allocation6], %s173
          %s175 = sshll.u32 [#allocation5], 4
          %s176 = int_to_ptr.vmem [resolvable:$true] %s175
          %181 = dma.hbm_to_vmem [thread:$0]  %s1, 12288, %s176, [#allocation6], 256, 256, 16
        $region16: #{tpu_custom_call.1} parent=11 // pred_fallthru
          _
        // Predicated region
        $region17: #{tpu_custom_call.1} parent=11 // pred_check
          %p182 = pneg %p86
        $region18: #{tpu_custom_call.1} parent=11 // pred_check_branch
          %184 = sbr.rel (%p182) target = $region20
        $region19: #{tpu_custom_call.1} parent=11 // pred_region
          _
        $region20: #{tpu_custom_call.1} parent=11 // pred_fallthru
          _
        // Predicated region
        $region21: #{tpu_custom_call.1} parent=11 // pred_check
          %p185 = pneg %p107
        $region22: #{tpu_custom_call.1} parent=11 // pred_check_branch
          %187 = sbr.rel (%p185) target = $region24
        $region23: #{tpu_custom_call.1} parent=11 // pred_region
          %s189 = ssub.s32 6144, 6144
          %190 = vsyncadd [#allocation6], %s189
          %s191 = sshll.u32 [#allocation7], 4
          %s192 = int_to_ptr.vmem [resolvable:$true] %s191
          %197 = dma.hbm_to_vmem [thread:$0]  %s3, 6144, %s192, [#allocation6], 128, 128, 8
        $region24: #{tpu_custom_call.1} parent=11 // pred_fallthru
          _
        // Predicated region
        $region25: #{tpu_custom_call.1} parent=11 // pred_check
          %p198 = pneg %p128
        $region26: #{tpu_custom_call.1} parent=11 // pred_check_branch
          %200 = sbr.rel (%p198) target = $region28
        $region27: #{tpu_custom_call.1} parent=11 // pred_region
          _
        $region28: #{tpu_custom_call.1} parent=11 // pred_fallthru
          _
      $region12: #{tpu_custom_call.1} parent=5 // pred_fallthru
        _
      %p201 = scmp.lt.s32.totalorder %s18, 2
      // Predicated region
      $region29: #{tpu_custom_call.1} parent=5 // pred_check
        %p202 = pneg %p201
      $region30: #{tpu_custom_call.1} parent=5 // pred_check_branch
        %204 = sbr.rel (%p202) target = $region32
      $region31: #{tpu_custom_call.1} parent=5 // pred_region
        // Predicated region
        $region33: #{tpu_custom_call.1} parent=31 // pred_check
          %p205 = pneg %p38
        $region34: #{tpu_custom_call.1} parent=31 // pred_check_branch
          %207 = sbr.rel (%p205) target = $region36
        $region35: #{tpu_custom_call.1} parent=31 // pred_region
          %s208 = sand.u32 %s28, 1
          %s209 = scalar_lea.sflag [#allocation3], %s208
          %s210 = sand.u32 %s28, 1
          %s211 = smul.addr %s210, 16
          %s212 = scalar_lea.vmem [#allocation2], %s211
          %s214 = ssub.s32 256, 256
          %215 = vsyncadd %s209, %s214
          %s216 = smul.addr %s18, 2
          %s217 = smul.addr %s216, 128
          %s218 = scalar_lea.hbm %s0, %s217
          %s219 = sshll.u32 %s212, 4
          %s220 = int_to_ptr.vmem [resolvable:$true] %s219
          %225 = dma.hbm_to_vmem [thread:$0]  %s218, 256, %s220, %s209, 128, 128, 8
        $region36: #{tpu_custom_call.1} parent=31 // pred_fallthru
          _
      $region32: #{tpu_custom_call.1} parent=5 // pred_fallthru
        _
      %p226 = scmp.le.s32.totalorder 1, %s18
      %p227 = scmp.lt.s32.totalorder %s18, 3
      %p228 = pnand %p226, %p227
      %p229 = pneg %p228
      // Predicated region
      $region37: #{tpu_custom_call.1} parent=5 // pred_check
        _
      $region38: #{tpu_custom_call.1} parent=5 // pred_check_branch
        %231 = sbr.rel (%p228) target = $region40
      $region39: #{tpu_custom_call.1} parent=5 // pred_region
        %s232 = ssub.s32 %s18, 1
        %s233 = sand.u32 %s31, 1
        %s234 = scalar_lea.sflag [#allocation3], %s233
        %s235 = sand.u32 %s31, 1
        %s236 = smul.addr %s235, 16
        %s237 = scalar_lea.vmem [#allocation2], %s236
        // Predicated region
        $region41: #{tpu_custom_call.1} parent=39 // pred_check
          %p238 = pneg %p44
        $region42: #{tpu_custom_call.1} parent=39 // pred_check_branch
          %240 = sbr.rel (%p238) target = $region44
        $region43: #{tpu_custom_call.1} parent=39 // pred_region
          %241 = dma.done %s234, 256
        $region44: #{tpu_custom_call.1} parent=39 // pred_fallthru
          _
        // Predicated region
        $region45: #{tpu_custom_call.1} parent=39 // pred_check
          %p242 = pneg %p65
        $region46: #{tpu_custom_call.1} parent=39 // pred_check_branch
          %244 = sbr.rel (%p242) target = $region48
        $region47: #{tpu_custom_call.1} parent=39 // pred_region
          %245 = dma.done [#allocation6], 12288
        $region48: #{tpu_custom_call.1} parent=39 // pred_fallthru
          _
        // Predicated region
        $region49: #{tpu_custom_call.1} parent=39 // pred_check
          %p246 = pneg %p107
        $region50: #{tpu_custom_call.1} parent=39 // pred_check_branch
          %248 = sbr.rel (%p246) target = $region52
        $region51: #{tpu_custom_call.1} parent=39 // pred_region
          %249 = dma.done [#allocation6], 6144
        $region52: #{tpu_custom_call.1} parent=39 // pred_fallthru
          _
        %s250 = sand.u32 %s31, 1
        %s251 = scalar_lea.sflag [#allocation3], %s250
        %s252 = sand.u32 %s31, 1
        %s253 = smul.addr %s252, 16
        %s254 = scalar_lea.vmem [#allocation2], %s253
        %p255 = pneg %p44
        %p256 = pneg %p41
        %p257 = pneg %p65
        %p258 = pneg %p62
        %p259 = pneg %p86
        %p260 = pneg %p83
        %p261 = pneg %p107
        %p262 = pneg %p104
        %p263 = pneg %p128
        %p264 = pneg %p125
        %p265 = pneg %p154
        %p266 = pneg %p151
        %s267 = sand.u32 %s141, 1
        %s268 = scalar_lea.sflag [#allocation4], %s267
        %s269 = sand.u32 %s141, 1
        %s270 = smul.addr %s269, 16
        %s271 = scalar_lea.vmem [#allocation8], %s270
        %v272 = vlaneseq
        %v273 = vshrl.u32 %v272, 7
        %v274 = vadd.s32 %v273, 8
        %v275 = vlaneseq
        %v276 = vand.u32 %v275, 127
        %v277 = vadd.s32 %v276, 1
        %vm278 = vcmp.eq.s32.totalorder %v273, %v277
        %vm279 = vcmp.eq.s32.totalorder %v274, %v277
        %v280 = vsel %vm278, 1, 0
        %v281 = vsel %vm279, 1, 0
        %v282 = vcvt.s32.f32 %v280
        %v283 = vcvt.s32.f32 %v281
        %v284 = vadd.s32 %v273, 1
        %v285 = vadd.s32 %v274, 1
        %vm286 = vcmp.eq.s32.totalorder %v276, %v284
        %vm287 = vcmp.eq.s32.totalorder %v276, %v285
        %v288 = vsel %vm286, 1, 0
        %v289 = vsel %vm287, 1, 0
        %v290 = vcvt.s32.f32 %v288
        %v291 = vcvt.s32.f32 %v289
        %v292 = vld [vmem:[%s237] sm:$0xff]
        %v293 = vld [vmem:[%s237 + $0x8] sm:$0xff]
        %vm294 = vcmask 130048
        %v296 = vsel %vm294, %v282, 0
        %v299 = vsel %vm294, %v283, 0
        %301 = vmatprep.subr.mxu0 0.0
        %302 = vmatpush1.msra.mxu0 0.0
        %303 = vmatprep.subr.mxu0 0.0
        %304 = vmatpush1.msra.mxu0 0.0
        %305 = vmatprep.subr.mxu0 0.0
        %306 = vmatpush1.msra.mxu0 0.0
        %307 = vmatprep.subr.mxu0 0.0
        %308 = vmatpush1.msra.mxu0 0.0
        %309 = vmatprep.subr.mxu0 0.0
        %310 = vmatpush1.msra.mxu0 0.0
        %311 = vmatprep.subr.mxu0 0.0
        %312 = vmatpush1.msra.mxu0 0.0
        %313 = vmatprep.subr.mxu0 0.0
        %314 = vmatpush1.msra.mxu0 0.0
        %315 = vmatprep.subr.mxu0 0.0
        %316 = vmatpush1.msra.mxu0 0.0
        %317 = vmatprep.subr.mxu0 0.0
        %318 = vmatpush1.msra.mxu0 0.0
        %319 = vmatprep.subr.mxu0 0.0
        %320 = vmatpush1.msra.mxu0 0.0
        %321 = vmatprep.subr.mxu0 0.0
        %322 = vmatpush1.msra.mxu0 0.0
        %323 = vmatprep.subr.mxu0 0.0
        %324 = vmatpush1.msra.mxu0 0.0
        %325 = vmatprep.subr.mxu0 0.0
        %326 = vmatpush1.msra.mxu0 0.0
        %327 = vmatprep.subr.mxu0 0.0
        %328 = vmatpush1.msra.mxu0 0.0
        %329 = vmatprep.subr.mxu0 0.0
        %330 = vmatpush1.msra.mxu0 %v293
        %331 = vmatprep.subr.mxu0 0.0
        %332 = vmatpush1.msra.mxu0 %v292
        %333 = vmatprep.subr.mxu0 0.0
        %334 = vmatpush2.msra.mxu0 0.0
        %335 = vmatprep.subr.mxu0 0.0
        %336 = vmatpush2.msra.mxu0 0.0
        %337 = vmatprep.subr.mxu0 0.0
        %338 = vmatpush2.msra.mxu0 0.0
        %339 = vmatprep.subr.mxu0 0.0
        %340 = vmatpush2.msra.mxu0 0.0
        %341 = vmatprep.subr.mxu0 0.0
        %342 = vmatpush2.msra.mxu0 0.0
        %343 = vmatprep.subr.mxu0 0.0
        %344 = vmatpush2.msra.mxu0 0.0
        %345 = vmatprep.subr.mxu0 0.0
        %346 = vmatpush2.msra.mxu0 0.0
        %347 = vmatprep.subr.mxu0 0.0
        %348 = vmatpush2.msra.mxu0 0.0
        %349 = vmatprep.subr.mxu0 0.0
        %350 = vmatpush2.msra.mxu0 0.0
        %351 = vmatprep.subr.mxu0 0.0
        %352 = vmatpush2.msra.mxu0 0.0
        %353 = vmatprep.subr.mxu0 0.0
        %354 = vmatpush2.msra.mxu0 0.0
        %355 = vmatprep.subr.mxu0 0.0
        %356 = vmatpush2.msra.mxu0 0.0
        %357 = vmatprep.subr.mxu0 0.0
        %358 = vmatpush2.msra.mxu0 0.0
        %359 = vmatprep.subr.mxu0 0.0
        %360 = vmatpush2.msra.mxu0 0.0
        %361 = vmatprep.subr.mxu0 0.0
        %362 = vmatpush2.msra.mxu0 0.0
        %363 = vmatprep.subr.mxu0 0.0
        %364 = vmatpush2.msra.mxu0 0.0
        %365 = vmatprep.mubr.f32.mxu0 0.0
        %366 = vmatmul.mubr.f32.gmra.mxu0 %v296
        %v367 = vpop.f32.mrf.mxu0
        %v368 = vadd.f32 0.0, %v367
        %v369 = vpop.f32.mrf.mxu0
        %370 = vmatprep.mubr.f32.mxu0 0.0
        %371 = vmatmul.mubr.f32.gmra.mxu0 %v299
        %v372 = vpop.f32.mrf.mxu0
        %v373 = vadd.f32 0.0, %v372
        %v374 = vpop.f32.mrf.mxu0
        %375 = vdwg.mxu0
        %v377 = vsel %vm294, %v290, 0
        %v380 = vsel %vm294, %v291, 0
        %382 = vmatprep.subr.mxu0 0.0
        %383 = vmatpush1.msra.mxu0 0.0
        %384 = vmatprep.subr.mxu0 0.0
        %385 = vmatpush1.msra.mxu0 0.0
        %386 = vmatprep.subr.mxu0 0.0
        %387 = vmatpush1.msra.mxu0 0.0
        %388 = vmatprep.subr.mxu0 0.0
        %389 = vmatpush1.msra.mxu0 0.0
        %390 = vmatprep.subr.mxu0 0.0
        %391 = vmatpush1.msra.mxu0 0.0
        %392 = vmatprep.subr.mxu0 0.0
        %393 = vmatpush1.msra.mxu0 0.0
        %394 = vmatprep.subr.mxu0 0.0
        %395 = vmatpush1.msra.mxu0 0.0
        %396 = vmatprep.subr.mxu0 0.0
        %397 = vmatpush1.msra.mxu0 0.0
        %398 = vmatprep.subr.mxu0 0.0
        %399 = vmatpush1.msra.mxu0 0.0
        %400 = vmatprep.subr.mxu0 0.0
        %401 = vmatpush1.msra.mxu0 0.0
        %402 = vmatprep.subr.mxu0 0.0
        %403 = vmatpush1.msra.mxu0 0.0
        %404 = vmatprep.subr.mxu0 0.0
        %405 = vmatpush1.msra.mxu0 0.0
        %406 = vmatprep.subr.mxu0 0.0
        %407 = vmatpush1.msra.mxu0 0.0
        %408 = vmatprep.subr.mxu0 0.0
        %409 = vmatpush1.msra.mxu0 0.0
        %410 = vmatprep.subr.mxu0 0.0
        %411 = vmatpush1.msra.mxu0 %v293
        %412 = vmatprep.subr.mxu0 0.0
        %413 = vmatpush1.msra.mxu0 %v292
        %414 = vmatprep.subr.mxu0 0.0
        %415 = vmatpush2.msra.mxu0 0.0
        %416 = vmatprep.subr.mxu0 0.0
        %417 = vmatpush2.msra.mxu0 0.0
        %418 = vmatprep.subr.mxu0 0.0
        %419 = vmatpush2.msra.mxu0 0.0
        %420 = vmatprep.subr.mxu0 0.0
        %421 = vmatpush2.msra.mxu0 0.0
        %422 = vmatprep.subr.mxu0 0.0
        %423 = vmatpush2.msra.mxu0 0.0
        %424 = vmatprep.subr.mxu0 0.0
        %425 = vmatpush2.msra.mxu0 0.0
        %426 = vmatprep.subr.mxu0 0.0
        %427 = vmatpush2.msra.mxu0 0.0
        %428 = vmatprep.subr.mxu0 0.0
        %429 = vmatpush2.msra.mxu0 0.0
        %430 = vmatprep.subr.mxu0 0.0
        %431 = vmatpush2.msra.mxu0 0.0
        %432 = vmatprep.subr.mxu0 0.0
        %433 = vmatpush2.msra.mxu0 0.0
        %434 = vmatprep.subr.mxu0 0.0
        %435 = vmatpush2.msra.mxu0 0.0
        %436 = vmatprep.subr.mxu0 0.0
        %437 = vmatpush2.msra.mxu0 0.0
        %438 = vmatprep.subr.mxu0 0.0
        %439 = vmatpush2.msra.mxu0 0.0
        %440 = vmatprep.subr.mxu0 0.0
        %441 = vmatpush2.msra.mxu0 0.0
        %442 = vmatprep.subr.mxu0 0.0
        %443 = vmatpush2.msra.mxu0 0.0
        %444 = vmatprep.subr.mxu0 0.0
        %445 = vmatpush2.msra.mxu0 0.0
        %446 = vmatprep.mubr.f32.mxu0 0.0
        %447 = vmatmul.mubr.f32.gmra.mxu0 %v377
        %v448 = vpop.f32.mrf.mxu0
        %v449 = vadd.f32 0.0, %v448
        %v450 = vpop.f32.mrf.mxu0
        %451 = vmatprep.mubr.f32.mxu0 0.0
        %452 = vmatmul.mubr.f32.gmra.mxu0 %v380
        %v453 = vpop.f32.mrf.mxu0
        %v454 = vadd.f32 0.0, %v453
        %v455 = vpop.f32.mrf.mxu0
        %456 = vdwg.mxu0
        %v457 = vld [vmem:[#allocation5] sm:$0xff]
        %v458 = vld [vmem:[#allocation5 + $0x8] sm:$0xff]
        %v459 = vld [vmem:[#allocation5 + $0x10] sm:$0xff]
        %v460 = vld [vmem:[#allocation5 + $0x18] sm:$0xff]
        %v461 = vld [vmem:[#allocation5 + $0x20] sm:$0xff]
        %v462 = vld [vmem:[#allocation5 + $0x28] sm:$0xff]
        %v463 = vld [vmem:[#allocation5 + $0x30] sm:$0xff]
        %v464 = vld [vmem:[#allocation5 + $0x38] sm:$0xff]
        %v465 = vld [vmem:[#allocation5 + $0x40] sm:$0xff]
        %v466 = vld [vmem:[#allocation5 + $0x48] sm:$0xff]
        %v467 = vld [vmem:[#allocation5 + $0x50] sm:$0xff]
        %v468 = vld [vmem:[#allocation5 + $0x58] sm:$0xff]
        %v469 = vld [vmem:[#allocation5 + $0x60] sm:$0xff]
        %v470 = vld [vmem:[#allocation5 + $0x68] sm:$0xff]
        %v471 = vld [vmem:[#allocation5 + $0x70] sm:$0xff]
        %v472 = vld [vmem:[#allocation5 + $0x78] sm:$0xff]
        %v473 = vld [vmem:[#allocation5 + $0x80] sm:$0xff]
        %v474 = vld [vmem:[#allocation5 + $0x88] sm:$0xff]
        %v475 = vld [vmem:[#allocation5 + $0x90] sm:$0xff]
        %v476 = vld [vmem:[#allocation5 + $0x98] sm:$0xff]
        %v477 = vld [vmem:[#allocation5 + $0xa0] sm:$0xff]
        %v478 = vld [vmem:[#allocation5 + $0xa8] sm:$0xff]
        %v479 = vld [vmem:[#allocation5 + $0xb0] sm:$0xff]
        %v480 = vld [vmem:[#allocation5 + $0xb8] sm:$0xff]
        %v481 = vld [vmem:[#allocation5 + $0xc0] sm:$0xff]
        %v482 = vld [vmem:[#allocation5 + $0xc8] sm:$0xff]
        %v483 = vld [vmem:[#allocation5 + $0xd0] sm:$0xff]
        %v484 = vld [vmem:[#allocation5 + $0xd8] sm:$0xff]
        %v485 = vld [vmem:[#allocation5 + $0xe0] sm:$0xff]
        %v486 = vld [vmem:[#allocation5 + $0xe8] sm:$0xff]
        %v487 = vld [vmem:[#allocation5 + $0xf0] sm:$0xff]
        %v488 = vld [vmem:[#allocation5 + $0xf8] sm:$0xff]
        %v489 = vld [vmem:[#allocation5 + $0x100] sm:$0xff]
        %v490 = vld [vmem:[#allocation5 + $0x108] sm:$0xff]
        %v491 = vld [vmem:[#allocation5 + $0x110] sm:$0xff]
        %v492 = vld [vmem:[#allocation5 + $0x118] sm:$0xff]
        %v493 = vld [vmem:[#allocation5 + $0x120] sm:$0xff]
        %v494 = vld [vmem:[#allocation5 + $0x128] sm:$0xff]
        %v495 = vld [vmem:[#allocation5 + $0x130] sm:$0xff]
        %v496 = vld [vmem:[#allocation5 + $0x138] sm:$0xff]
        %v497 = vld [vmem:[#allocation5 + $0x140] sm:$0xff]
        %v498 = vld [vmem:[#allocation5 + $0x148] sm:$0xff]
        %v499 = vld [vmem:[#allocation5 + $0x150] sm:$0xff]
        %v500 = vld [vmem:[#allocation5 + $0x158] sm:$0xff]
        %v501 = vld [vmem:[#allocation5 + $0x160] sm:$0xff]
        %v502 = vld [vmem:[#allocation5 + $0x168] sm:$0xff]
        %v503 = vld [vmem:[#allocation5 + $0x170] sm:$0xff]
        %v504 = vld [vmem:[#allocation5 + $0x178] sm:$0xff]
        %v505 = vld [vmem:[#allocation5 + $0x180] sm:$0xff]
        %v506 = vld [vmem:[#allocation5 + $0x188] sm:$0xff]
        %v507 = vld [vmem:[#allocation5 + $0x190] sm:$0xff]
        %v508 = vld [vmem:[#allocation5 + $0x198] sm:$0xff]
        %v509 = vld [vmem:[#allocation5 + $0x1a0] sm:$0xff]
        %v510 = vld [vmem:[#allocation5 + $0x1a8] sm:$0xff]
        %v511 = vld [vmem:[#allocation5 + $0x1b0] sm:$0xff]
        %v512 = vld [vmem:[#allocation5 + $0x1b8] sm:$0xff]
        %v513 = vld [vmem:[#allocation5 + $0x1c0] sm:$0xff]
        %v514 = vld [vmem:[#allocation5 + $0x1c8] sm:$0xff]
        %v515 = vld [vmem:[#allocation5 + $0x1d0] sm:$0xff]
        %v516 = vld [vmem:[#allocation5 + $0x1d8] sm:$0xff]
        %v517 = vld [vmem:[#allocation5 + $0x1e0] sm:$0xff]
        %v518 = vld [vmem:[#allocation5 + $0x1e8] sm:$0xff]
        %v519 = vld [vmem:[#allocation5 + $0x1f0] sm:$0xff]
        %v520 = vld [vmem:[#allocation5 + $0x1f8] sm:$0xff]
        %v521 = vld [vmem:[#allocation5 + $0x200] sm:$0xff]
        %v522 = vld [vmem:[#allocation5 + $0x208] sm:$0xff]
        %v523 = vld [vmem:[#allocation5 + $0x210] sm:$0xff]
        %v524 = vld [vmem:[#allocation5 + $0x218] sm:$0xff]
        %v525 = vld [vmem:[#allocation5 + $0x220] sm:$0xff]
        %v526 = vld [vmem:[#allocation5 + $0x228] sm:$0xff]
        %v527 = vld [vmem:[#allocation5 + $0x230] sm:$0xff]
        %v528 = vld [vmem:[#allocation5 + $0x238] sm:$0xff]
        %v529 = vld [vmem:[#allocation5 + $0x240] sm:$0xff]
        %v530 = vld [vmem:[#allocation5 + $0x248] sm:$0xff]
        %v531 = vld [vmem:[#allocation5 + $0x250] sm:$0xff]
        %v532 = vld [vmem:[#allocation5 + $0x258] sm:$0xff]
        %v533 = vld [vmem:[#allocation5 + $0x260] sm:$0xff]
        %v534 = vld [vmem:[#allocation5 + $0x268] sm:$0xff]
        %v535 = vld [vmem:[#allocation5 + $0x270] sm:$0xff]
        %v536 = vld [vmem:[#allocation5 + $0x278] sm:$0xff]
        %v537 = vld [vmem:[#allocation5 + $0x280] sm:$0xff]
        %v538 = vld [vmem:[#allocation5 + $0x288] sm:$0xff]
        %v539 = vld [vmem:[#allocation5 + $0x290] sm:$0xff]
        %v540 = vld [vmem:[#allocation5 + $0x298] sm:$0xff]
        %v541 = vld [vmem:[#allocation5 + $0x2a0] sm:$0xff]
        %v542 = vld [vmem:[#allocation5 + $0x2a8] sm:$0xff]
        %v543 = vld [vmem:[#allocation5 + $0x2b0] sm:$0xff]
        %v544 = vld [vmem:[#allocation5 + $0x2b8] sm:$0xff]
        %v545 = vld [vmem:[#allocation5 + $0x2c0] sm:$0xff]
        %v546 = vld [vmem:[#allocation5 + $0x2c8] sm:$0xff]
        %v547 = vld [vmem:[#allocation5 + $0x2d0] sm:$0xff]
        %v548 = vld [vmem:[#allocation5 + $0x2d8] sm:$0xff]
        %v549 = vld [vmem:[#allocation5 + $0x2e0] sm:$0xff]
        %v550 = vld [vmem:[#allocation5 + $0x2e8] sm:$0xff]
        %v551 = vld [vmem:[#allocation5 + $0x2f0] sm:$0xff]
        %v552 = vld [vmem:[#allocation5 + $0x2f8] sm:$0xff]
        %553 = vmatprep.subr.mxu0 %v488
        %554 = vmatpush1.msra.mxu0 %v487
        %555 = vmatprep.subr.mxu0 %v486
        %556 = vmatpush1.msra.mxu0 %v485
        %557 = vmatprep.subr.mxu0 %v484
        %558 = vmatpush1.msra.mxu0 %v483
        %559 = vmatprep.subr.mxu0 %v482
        %560 = vmatpush1.msra.mxu0 %v481
        %561 = vmatprep.subr.mxu0 %v480
        %562 = vmatpush1.msra.mxu0 %v479
        %563 = vmatprep.subr.mxu0 %v478
        %564 = vmatpush1.msra.mxu0 %v477
        %565 = vmatprep.subr.mxu0 %v476
        %566 = vmatpush1.msra.mxu0 %v475
        %567 = vmatprep.subr.mxu0 %v474
        %568 = vmatpush1.msra.mxu0 %v473
        %569 = vmatprep.subr.mxu0 %v472
        %570 = vmatpush1.msra.mxu0 %v471
        %571 = vmatprep.subr.mxu0 %v470
        %572 = vmatpush1.msra.mxu0 %v469
        %573 = vmatprep.subr.mxu0 %v468
        %574 = vmatpush1.msra.mxu0 %v467
        %575 = vmatprep.subr.mxu0 %v466
        %576 = vmatpush1.msra.mxu0 %v465
        %577 = vmatprep.subr.mxu0 %v464
        %578 = vmatpush1.msra.mxu0 %v463
        %579 = vmatprep.subr.mxu0 %v462
        %580 = vmatpush1.msra.mxu0 %v461
        %581 = vmatprep.subr.mxu0 %v460
        %582 = vmatpush1.msra.mxu0 %v459
        %583 = vmatprep.subr.mxu0 %v458
        %584 = vmatpush1.msra.mxu0 %v457
        %585 = vmatprep.subr.mxu0 %v520
        %586 = vmatpush2.msra.mxu0 %v519
        %587 = vmatprep.subr.mxu0 %v518
        %588 = vmatpush2.msra.mxu0 %v517
        %589 = vmatprep.subr.mxu0 %v516
        %590 = vmatpush2.msra.mxu0 %v515
        %591 = vmatprep.subr.mxu0 %v514
        %592 = vmatpush2.msra.mxu0 %v513
        %593 = vmatprep.subr.mxu0 %v512
        %594 = vmatpush2.msra.mxu0 %v511
        %595 = vmatprep.subr.mxu0 %v510
        %596 = vmatpush2.msra.mxu0 %v509
        %597 = vmatprep.subr.mxu0 %v508
        %598 = vmatpush2.msra.mxu0 %v507
        %599 = vmatprep.subr.mxu0 %v506
        %600 = vmatpush2.msra.mxu0 %v505
        %601 = vmatprep.subr.mxu0 %v504
        %602 = vmatpush2.msra.mxu0 %v503
        %603 = vmatprep.subr.mxu0 %v502
        %604 = vmatpush2.msra.mxu0 %v501
        %605 = vmatprep.subr.mxu0 %v500
        %606 = vmatpush2.msra.mxu0 %v499
        %607 = vmatprep.subr.mxu0 %v498
        %608 = vmatpush2.msra.mxu0 %v497
        %609 = vmatprep.subr.mxu0 %v496
        %610 = vmatpush2.msra.mxu0 %v495
        %611 = vmatprep.subr.mxu0 %v494
        %612 = vmatpush2.msra.mxu0 %v493
        %613 = vmatprep.subr.mxu0 %v492
        %614 = vmatpush2.msra.mxu0 %v491
        %615 = vmatprep.subr.mxu0 %v490
        %616 = vmatpush2.msra.mxu0 %v489
        %617 = vmatprep.mubr.f32.mxu0 %v292
        %618 = vmatmul.mubr.f32.gmra.mxu0 %v368
        %v619 = vpop.f32.mrf.mxu0
        %v620 = vadd.f32 0.0, %v619
        %v621 = vpop.f32.mrf.mxu0
        %v622 = vadd.f32 0.0, %v621
        %623 = vmatprep.mubr.f32.mxu0 %v293
        %624 = vmatmul.mubr.f32.gmra.mxu0 %v373
        %v625 = vpop.f32.mrf.mxu0
        %v626 = vadd.f32 0.0, %v625
        %v627 = vpop.f32.mrf.mxu0
        %v628 = vadd.f32 0.0, %v627
        %629 = vdwg.mxu0
        %630 = vmatprep.subr.mxu0 %v552
        %631 = vmatpush1.msra.mxu0 %v551
        %632 = vmatprep.subr.mxu0 %v550
        %633 = vmatpush1.msra.mxu0 %v549
        %634 = vmatprep.subr.mxu0 %v548
        %635 = vmatpush1.msra.mxu0 %v547
        %636 = vmatprep.subr.mxu0 %v546
        %637 = vmatpush1.msra.mxu0 %v545
        %638 = vmatprep.subr.mxu0 %v544
        %639 = vmatpush1.msra.mxu0 %v543
        %640 = vmatprep.subr.mxu0 %v542
        %641 = vmatpush1.msra.mxu0 %v541
        %642 = vmatprep.subr.mxu0 %v540
        %643 = vmatpush1.msra.mxu0 %v539
        %644 = vmatprep.subr.mxu0 %v538
        %645 = vmatpush1.msra.mxu0 %v537
        %646 = vmatprep.subr.mxu0 %v536
        %647 = vmatpush1.msra.mxu0 %v535
        %648 = vmatprep.subr.mxu0 %v534
        %649 = vmatpush1.msra.mxu0 %v533
        %650 = vmatprep.subr.mxu0 %v532
        %651 = vmatpush1.msra.mxu0 %v531
        %652 = vmatprep.subr.mxu0 %v530
        %653 = vmatpush1.msra.mxu0 %v529
        %654 = vmatprep.subr.mxu0 %v528
        %655 = vmatpush1.msra.mxu0 %v527
        %656 = vmatprep.subr.mxu0 %v526
        %657 = vmatpush1.msra.mxu0 %v525
        %658 = vmatprep.subr.mxu0 %v524
        %659 = vmatpush1.msra.mxu0 %v523
        %660 = vmatprep.subr.mxu0 %v522
        %661 = vmatpush1.msra.mxu0 %v521
        %662 = vmatprep.subr.mxu0 0.0
        %663 = vmatpush2.msra.mxu0 0.0
        %664 = vmatprep.subr.mxu0 0.0
        %665 = vmatpush2.msra.mxu0 0.0
        %666 = vmatprep.subr.mxu0 0.0
        %667 = vmatpush2.msra.mxu0 0.0
        %668 = vmatprep.subr.mxu0 0.0
        %669 = vmatpush2.msra.mxu0 0.0
        %670 = vmatprep.subr.mxu0 0.0
        %671 = vmatpush2.msra.mxu0 0.0
        %672 = vmatprep.subr.mxu0 0.0
        %673 = vmatpush2.msra.mxu0 0.0
        %674 = vmatprep.subr.mxu0 0.0
        %675 = vmatpush2.msra.mxu0 0.0
        %676 = vmatprep.subr.mxu0 0.0
        %677 = vmatpush2.msra.mxu0 0.0
        %678 = vmatprep.subr.mxu0 0.0
        %679 = vmatpush2.msra.mxu0 0.0
        %680 = vmatprep.subr.mxu0 0.0
        %681 = vmatpush2.msra.mxu0 0.0
        %682 = vmatprep.subr.mxu0 0.0
        %683 = vmatpush2.msra.mxu0 0.0
        %684 = vmatprep.subr.mxu0 0.0
        %685 = vmatpush2.msra.mxu0 0.0
        %686 = vmatprep.subr.mxu0 0.0
        %687 = vmatpush2.msra.mxu0 0.0
        %688 = vmatprep.subr.mxu0 0.0
        %689 = vmatpush2.msra.mxu0 0.0
        %690 = vmatprep.subr.mxu0 0.0
        %691 = vmatpush2.msra.mxu0 0.0
        %692 = vmatprep.subr.mxu0 0.0
        %693 = vmatpush2.msra.mxu0 0.0
        %694 = vmatprep.mubr.f32.mxu0 0.0
        %695 = vmatmul.mubr.f32.gmra.mxu0 %v449
        %v696 = vpop.f32.mrf.mxu0
        %v697 = vadd.f32 %v620, %v696
        %v698 = vpop.f32.mrf.mxu0
        %v699 = vadd.f32 %v622, %v698
        %700 = vmatprep.mubr.f32.mxu0 0.0
        %701 = vmatmul.mubr.f32.gmra.mxu0 %v454
        %v702 = vpop.f32.mrf.mxu0
        %v703 = vadd.f32 %v626, %v702
        %v704 = vpop.f32.mrf.mxu0
        %v705 = vadd.f32 %v628, %v704
        %706 = vdwg.mxu0
        %v707 = vld [vmem:[%s2] sm:$0x1]
        %v709 = vlaneseq
        %v710 = vshrl.u32 %v709, 7
        %v711 = vsub.s32 0, %v710
        %v712 = vrot.slane %v707, %v711
        %v714 = vadd.f32 %v697, %v712
        %v715 = vadd.f32 %v703, %v712
        %v716 = vmax.f32 %v714, 0.0
        %v717 = vmax.f32 %v715, 0.0
        %718 = vmatprep.subr.mxu0 0.0
        %719 = vmatpush1.msra.mxu0 0.0
        %720 = vmatprep.subr.mxu0 0.0
        %721 = vmatpush1.msra.mxu0 0.0
        %722 = vmatprep.subr.mxu0 0.0
        %723 = vmatpush1.msra.mxu0 0.0
        %724 = vmatprep.subr.mxu0 0.0
        %725 = vmatpush1.msra.mxu0 0.0
        %726 = vmatprep.subr.mxu0 0.0
        %727 = vmatpush1.msra.mxu0 0.0
        %728 = vmatprep.subr.mxu0 0.0
        %729 = vmatpush1.msra.mxu0 0.0
        %730 = vmatprep.subr.mxu0 0.0
        %731 = vmatpush1.msra.mxu0 0.0
        %732 = vmatprep.subr.mxu0 0.0
        %733 = vmatpush1.msra.mxu0 0.0
        %734 = vmatprep.subr.mxu0 0.0
        %735 = vmatpush1.msra.mxu0 0.0
        %736 = vmatprep.subr.mxu0 0.0
        %737 = vmatpush1.msra.mxu0 0.0
        %738 = vmatprep.subr.mxu0 0.0
        %739 = vmatpush1.msra.mxu0 0.0
        %740 = vmatprep.subr.mxu0 0.0
        %741 = vmatpush1.msra.mxu0 0.0
        %742 = vmatprep.subr.mxu0 0.0
        %743 = vmatpush1.msra.mxu0 0.0
        %744 = vmatprep.subr.mxu0 0.0
        %745 = vmatpush1.msra.mxu0 0.0
        %746 = vmatprep.subr.mxu0 0.0
        %747 = vmatpush1.msra.mxu0 %v717
        %748 = vmatprep.subr.mxu0 0.0
        %749 = vmatpush1.msra.mxu0 %v716
        %750 = vmatprep.subr.mxu0 0.0
        %751 = vmatpush2.msra.mxu0 0.0
        %752 = vmatprep.subr.mxu0 0.0
        %753 = vmatpush2.msra.mxu0 0.0
        %754 = vmatprep.subr.mxu0 0.0
        %755 = vmatpush2.msra.mxu0 0.0
        %756 = vmatprep.subr.mxu0 0.0
        %757 = vmatpush2.msra.mxu0 0.0
        %758 = vmatprep.subr.mxu0 0.0
        %759 = vmatpush2.msra.mxu0 0.0
        %760 = vmatprep.subr.mxu0 0.0
        %761 = vmatpush2.msra.mxu0 0.0
        %762 = vmatprep.subr.mxu0 0.0
        %763 = vmatpush2.msra.mxu0 0.0
        %764 = vmatprep.subr.mxu0 0.0
        %765 = vmatpush2.msra.mxu0 0.0
        %766 = vmatprep.subr.mxu0 0.0
        %767 = vmatpush2.msra.mxu0 0.0
        %768 = vmatprep.subr.mxu0 0.0
        %769 = vmatpush2.msra.mxu0 0.0
        %770 = vmatprep.subr.mxu0 0.0
        %771 = vmatpush2.msra.mxu0 0.0
        %772 = vmatprep.subr.mxu0 0.0
        %773 = vmatpush2.msra.mxu0 0.0
        %774 = vmatprep.subr.mxu0 0.0
        %775 = vmatpush2.msra.mxu0 0.0
        %776 = vmatprep.subr.mxu0 0.0
        %777 = vmatpush2.msra.mxu0 0.0
        %778 = vmatprep.subr.mxu0 0.0
        %779 = vmatpush2.msra.mxu0 0.0
        %780 = vmatprep.subr.mxu0 0.0
        %781 = vmatpush2.msra.mxu0 0.0
        %782 = vmatprep.mubr.f32.mxu0 0.0
        %783 = vmatmul.mubr.f32.gmra.mxu0 %v296
        %v784 = vpop.f32.mrf.mxu0
        %v785 = vadd.f32 0.0, %v784
        %v786 = vpop.f32.mrf.mxu0
        %787 = vmatprep.mubr.f32.mxu0 0.0
        %788 = vmatmul.mubr.f32.gmra.mxu0 %v299
        %v789 = vpop.f32.mrf.mxu0
        %v790 = vadd.f32 0.0, %v789
        %v791 = vpop.f32.mrf.mxu0
        %792 = vdwg.mxu0
        %793 = vmatprep.subr.mxu0 0.0
        %794 = vmatpush1.msra.mxu0 0.0
        %795 = vmatprep.subr.mxu0 0.0
        %796 = vmatpush1.msra.mxu0 0.0
        %797 = vmatprep.subr.mxu0 0.0
        %798 = vmatpush1.msra.mxu0 0.0
        %799 = vmatprep.subr.mxu0 0.0
        %800 = vmatpush1.msra.mxu0 0.0
        %801 = vmatprep.subr.mxu0 0.0
        %802 = vmatpush1.msra.mxu0 0.0
        %803 = vmatprep.subr.mxu0 0.0
        %804 = vmatpush1.msra.mxu0 0.0
        %805 = vmatprep.subr.mxu0 0.0
        %806 = vmatpush1.msra.mxu0 0.0
        %807 = vmatprep.subr.mxu0 0.0
        %808 = vmatpush1.msra.mxu0 0.0
        %809 = vmatprep.subr.mxu0 0.0
        %810 = vmatpush1.msra.mxu0 0.0
        %811 = vmatprep.subr.mxu0 0.0
        %812 = vmatpush1.msra.mxu0 0.0
        %813 = vmatprep.subr.mxu0 0.0
        %814 = vmatpush1.msra.mxu0 0.0
        %815 = vmatprep.subr.mxu0 0.0
        %816 = vmatpush1.msra.mxu0 0.0
        %817 = vmatprep.subr.mxu0 0.0
        %818 = vmatpush1.msra.mxu0 0.0
        %819 = vmatprep.subr.mxu0 0.0
        %820 = vmatpush1.msra.mxu0 0.0
        %821 = vmatprep.subr.mxu0 0.0
        %822 = vmatpush1.msra.mxu0 %v717
        %823 = vmatprep.subr.mxu0 0.0
        %824 = vmatpush1.msra.mxu0 %v716
        %825 = vmatprep.subr.mxu0 0.0
        %826 = vmatpush2.msra.mxu0 0.0
        %827 = vmatprep.subr.mxu0 0.0
        %828 = vmatpush2.msra.mxu0 0.0
        %829 = vmatprep.subr.mxu0 0.0
        %830 = vmatpush2.msra.mxu0 0.0
        %831 = vmatprep.subr.mxu0 0.0
        %832 = vmatpush2.msra.mxu0 0.0
        %833 = vmatprep.subr.mxu0 0.0
        %834 = vmatpush2.msra.mxu0 0.0
        %835 = vmatprep.subr.mxu0 0.0
        %836 = vmatpush2.msra.mxu0 0.0
        %837 = vmatprep.subr.mxu0 0.0
        %838 = vmatpush2.msra.mxu0 0.0
        %839 = vmatprep.subr.mxu0 0.0
        %840 = vmatpush2.msra.mxu0 0.0
        %841 = vmatprep.subr.mxu0 0.0
        %842 = vmatpush2.msra.mxu0 0.0
        %843 = vmatprep.subr.mxu0 0.0
        %844 = vmatpush2.msra.mxu0 0.0
        %845 = vmatprep.subr.mxu0 0.0
        %846 = vmatpush2.msra.mxu0 0.0
        %847 = vmatprep.subr.mxu0 0.0
        %848 = vmatpush2.msra.mxu0 0.0
        %849 = vmatprep.subr.mxu0 0.0
        %850 = vmatpush2.msra.mxu0 0.0
        %851 = vmatprep.subr.mxu0 0.0
        %852 = vmatpush2.msra.mxu0 0.0
        %853 = vmatprep.subr.mxu0 0.0
        %854 = vmatpush2.msra.mxu0 0.0
        %855 = vmatprep.subr.mxu0 0.0
        %856 = vmatpush2.msra.mxu0 0.0
        %857 = vmatprep.mubr.f32.mxu0 0.0
        %858 = vmatmul.mubr.f32.gmra.mxu0 %v377
        %v859 = vpop.f32.mrf.mxu0
        %v860 = vadd.f32 0.0, %v859
        %v861 = vpop.f32.mrf.mxu0
        %862 = vmatprep.mubr.f32.mxu0 0.0
        %863 = vmatmul.mubr.f32.gmra.mxu0 %v380
        %v864 = vpop.f32.mrf.mxu0
        %v865 = vadd.f32 0.0, %v864
        %v866 = vpop.f32.mrf.mxu0
        %867 = vdwg.mxu0
        %v868 = vld [vmem:[#allocation7] sm:$0xff]
        %v869 = vld [vmem:[#allocation7 + $0x8] sm:$0xff]
        %v870 = vld [vmem:[#allocation7 + $0x10] sm:$0xff]
        %v871 = vld [vmem:[#allocation7 + $0x18] sm:$0xff]
        %v872 = vld [vmem:[#allocation7 + $0x20] sm:$0xff]
        %v873 = vld [vmem:[#allocation7 + $0x28] sm:$0xff]
        %v874 = vld [vmem:[#allocation7 + $0x30] sm:$0xff]
        %v875 = vld [vmem:[#allocation7 + $0x38] sm:$0xff]
        %v876 = vld [vmem:[#allocation7 + $0x40] sm:$0xff]
        %v877 = vld [vmem:[#allocation7 + $0x48] sm:$0xff]
        %v878 = vld [vmem:[#allocation7 + $0x50] sm:$0xff]
        %v879 = vld [vmem:[#allocation7 + $0x58] sm:$0xff]
        %v880 = vld [vmem:[#allocation7 + $0x60] sm:$0xff]
        %v881 = vld [vmem:[#allocation7 + $0x68] sm:$0xff]
        %v882 = vld [vmem:[#allocation7 + $0x70] sm:$0xff]
        %v883 = vld [vmem:[#allocation7 + $0x78] sm:$0xff]
        %v884 = vld [vmem:[#allocation7 + $0x80] sm:$0xff]
        %v885 = vld [vmem:[#allocation7 + $0x88] sm:$0xff]
        %v886 = vld [vmem:[#allocation7 + $0x90] sm:$0xff]
        %v887 = vld [vmem:[#allocation7 + $0x98] sm:$0xff]
        %v888 = vld [vmem:[#allocation7 + $0xa0] sm:$0xff]
        %v889 = vld [vmem:[#allocation7 + $0xa8] sm:$0xff]
        %v890 = vld [vmem:[#allocation7 + $0xb0] sm:$0xff]
        %v891 = vld [vmem:[#allocation7 + $0xb8] sm:$0xff]
        %v892 = vld [vmem:[#allocation7 + $0xc0] sm:$0xff]
        %v893 = vld [vmem:[#allocation7 + $0xc8] sm:$0xff]
        %v894 = vld [vmem:[#allocation7 + $0xd0] sm:$0xff]
        %v895 = vld [vmem:[#allocation7 + $0xd8] sm:$0xff]
        %v896 = vld [vmem:[#allocation7 + $0xe0] sm:$0xff]
        %v897 = vld [vmem:[#allocation7 + $0xe8] sm:$0xff]
        %v898 = vld [vmem:[#allocation7 + $0xf0] sm:$0xff]
        %v899 = vld [vmem:[#allocation7 + $0xf8] sm:$0xff]
        %v900 = vld [vmem:[#allocation7 + $0x100] sm:$0xff]
        %v901 = vld [vmem:[#allocation7 + $0x108] sm:$0xff]
        %v902 = vld [vmem:[#allocation7 + $0x110] sm:$0xff]
        %v903 = vld [vmem:[#allocation7 + $0x118] sm:$0xff]
        %v904 = vld [vmem:[#allocation7 + $0x120] sm:$0xff]
        %v905 = vld [vmem:[#allocation7 + $0x128] sm:$0xff]
        %v906 = vld [vmem:[#allocation7 + $0x130] sm:$0xff]
        %v907 = vld [vmem:[#allocation7 + $0x138] sm:$0xff]
        %v908 = vld [vmem:[#allocation7 + $0x140] sm:$0xff]
        %v909 = vld [vmem:[#allocation7 + $0x148] sm:$0xff]
        %v910 = vld [vmem:[#allocation7 + $0x150] sm:$0xff]
        %v911 = vld [vmem:[#allocation7 + $0x158] sm:$0xff]
        %v912 = vld [vmem:[#allocation7 + $0x160] sm:$0xff]
        %v913 = vld [vmem:[#allocation7 + $0x168] sm:$0xff]
        %v914 = vld [vmem:[#allocation7 + $0x170] sm:$0xff]
        %v915 = vld [vmem:[#allocation7 + $0x178] sm:$0xff]
        %916 = vmatprep.subr.mxu0 0.0
        %917 = vmatpush1.msra.mxu0 %v883
        %918 = vmatprep.subr.mxu0 0.0
        %919 = vmatpush1.msra.mxu0 %v882
        %920 = vmatprep.subr.mxu0 0.0
        %921 = vmatpush1.msra.mxu0 %v881
        %922 = vmatprep.subr.mxu0 0.0
        %923 = vmatpush1.msra.mxu0 %v880
        %924 = vmatprep.subr.mxu0 0.0
        %925 = vmatpush1.msra.mxu0 %v879
        %926 = vmatprep.subr.mxu0 0.0
        %927 = vmatpush1.msra.mxu0 %v878
        %928 = vmatprep.subr.mxu0 0.0
        %929 = vmatpush1.msra.mxu0 %v877
        %930 = vmatprep.subr.mxu0 0.0
        %931 = vmatpush1.msra.mxu0 %v876
        %932 = vmatprep.subr.mxu0 0.0
        %933 = vmatpush1.msra.mxu0 %v875
        %934 = vmatprep.subr.mxu0 0.0
        %935 = vmatpush1.msra.mxu0 %v874
        %936 = vmatprep.subr.mxu0 0.0
        %937 = vmatpush1.msra.mxu0 %v873
        %938 = vmatprep.subr.mxu0 0.0
        %939 = vmatpush1.msra.mxu0 %v872
        %940 = vmatprep.subr.mxu0 0.0
        %941 = vmatpush1.msra.mxu0 %v871
        %942 = vmatprep.subr.mxu0 0.0
        %943 = vmatpush1.msra.mxu0 %v870
        %944 = vmatprep.subr.mxu0 0.0
        %945 = vmatpush1.msra.mxu0 %v869
        %946 = vmatprep.subr.mxu0 0.0
        %947 = vmatpush1.msra.mxu0 %v868
        %948 = vmatprep.subr.mxu0 0.0
        %949 = vmatpush2.msra.mxu0 %v899
        %950 = vmatprep.subr.mxu0 0.0
        %951 = vmatpush2.msra.mxu0 %v898
        %952 = vmatprep.subr.mxu0 0.0
        %953 = vmatpush2.msra.mxu0 %v897
        %954 = vmatprep.subr.mxu0 0.0
        %955 = vmatpush2.msra.mxu0 %v896
        %956 = vmatprep.subr.mxu0 0.0
        %957 = vmatpush2.msra.mxu0 %v895
        %958 = vmatprep.subr.mxu0 0.0
        %959 = vmatpush2.msra.mxu0 %v894
        %960 = vmatprep.subr.mxu0 0.0
        %961 = vmatpush2.msra.mxu0 %v893
        %962 = vmatprep.subr.mxu0 0.0
        %963 = vmatpush2.msra.mxu0 %v892
        %964 = vmatprep.subr.mxu0 0.0
        %965 = vmatpush2.msra.mxu0 %v891
        %966 = vmatprep.subr.mxu0 0.0
        %967 = vmatpush2.msra.mxu0 %v890
        %968 = vmatprep.subr.mxu0 0.0
        %969 = vmatpush2.msra.mxu0 %v889
        %970 = vmatprep.subr.mxu0 0.0
        %971 = vmatpush2.msra.mxu0 %v888
        %972 = vmatprep.subr.mxu0 0.0
        %973 = vmatpush2.msra.mxu0 %v887
        %974 = vmatprep.subr.mxu0 0.0
        %975 = vmatpush2.msra.mxu0 %v886
        %976 = vmatprep.subr.mxu0 0.0
        %977 = vmatpush2.msra.mxu0 %v885
        %978 = vmatprep.subr.mxu0 0.0
        %979 = vmatpush2.msra.mxu0 %v884
        %980 = vmatprep.mubr.f32.mxu0 %v716
        %981 = vmatmul.mubr.f32.gmra.mxu0 %v785
        %v982 = vpop.f32.mrf.mxu0
        %v983 = vadd.f32 %v699, %v982
        %v984 = vpop.f32.mrf.mxu0
        %985 = vmatprep.mubr.f32.mxu0 %v717
        %986 = vmatmul.mubr.f32.gmra.mxu0 %v790
        %v987 = vpop.f32.mrf.mxu0
        %v988 = vadd.f32 %v705, %v987
        %v989 = vpop.f32.mrf.mxu0
        %990 = vdwg.mxu0
        %991 = vmatprep.subr.mxu0 0.0
        %992 = vmatpush1.msra.mxu0 %v915
        %993 = vmatprep.subr.mxu0 0.0
        %994 = vmatpush1.msra.mxu0 %v914
        %995 = vmatprep.subr.mxu0 0.0
        %996 = vmatpush1.msra.mxu0 %v913
        %997 = vmatprep.subr.mxu0 0.0
        %998 = vmatpush1.msra.mxu0 %v912
        %999 = vmatprep.subr.mxu0 0.0
        %1000 = vmatpush1.msra.mxu0 %v911
        %1001 = vmatprep.subr.mxu0 0.0
        %1002 = vmatpush1.msra.mxu0 %v910
        %1003 = vmatprep.subr.mxu0 0.0
        %1004 = vmatpush1.msra.mxu0 %v909
        %1005 = vmatprep.subr.mxu0 0.0
        %1006 = vmatpush1.msra.mxu0 %v908
        %1007 = vmatprep.subr.mxu0 0.0
        %1008 = vmatpush1.msra.mxu0 %v907
        %1009 = vmatprep.subr.mxu0 0.0
        %1010 = vmatpush1.msra.mxu0 %v906
        %1011 = vmatprep.subr.mxu0 0.0
        %1012 = vmatpush1.msra.mxu0 %v905
        %1013 = vmatprep.subr.mxu0 0.0
        %1014 = vmatpush1.msra.mxu0 %v904
        %1015 = vmatprep.subr.mxu0 0.0
        %1016 = vmatpush1.msra.mxu0 %v903
        %1017 = vmatprep.subr.mxu0 0.0
        %1018 = vmatpush1.msra.mxu0 %v902
        %1019 = vmatprep.subr.mxu0 0.0
        %1020 = vmatpush1.msra.mxu0 %v901
        %1021 = vmatprep.subr.mxu0 0.0
        %1022 = vmatpush1.msra.mxu0 %v900
        %1023 = vmatprep.subr.mxu0 0.0
        %1024 = vmatpush2.msra.mxu0 0.0
        %1025 = vmatprep.subr.mxu0 0.0
        %1026 = vmatpush2.msra.mxu0 0.0
        %1027 = vmatprep.subr.mxu0 0.0
        %1028 = vmatpush2.msra.mxu0 0.0
        %1029 = vmatprep.subr.mxu0 0.0
        %1030 = vmatpush2.msra.mxu0 0.0
        %1031 = vmatprep.subr.mxu0 0.0
        %1032 = vmatpush2.msra.mxu0 0.0
        %1033 = vmatprep.subr.mxu0 0.0
        %1034 = vmatpush2.msra.mxu0 0.0
        %1035 = vmatprep.subr.mxu0 0.0
        %1036 = vmatpush2.msra.mxu0 0.0
        %1037 = vmatprep.subr.mxu0 0.0
        %1038 = vmatpush2.msra.mxu0 0.0
        %1039 = vmatprep.subr.mxu0 0.0
        %1040 = vmatpush2.msra.mxu0 0.0
        %1041 = vmatprep.subr.mxu0 0.0
        %1042 = vmatpush2.msra.mxu0 0.0
        %1043 = vmatprep.subr.mxu0 0.0
        %1044 = vmatpush2.msra.mxu0 0.0
        %1045 = vmatprep.subr.mxu0 0.0
        %1046 = vmatpush2.msra.mxu0 0.0
        %1047 = vmatprep.subr.mxu0 0.0
        %1048 = vmatpush2.msra.mxu0 0.0
        %1049 = vmatprep.subr.mxu0 0.0
        %1050 = vmatpush2.msra.mxu0 0.0
        %1051 = vmatprep.subr.mxu0 0.0
        %1052 = vmatpush2.msra.mxu0 0.0
        %1053 = vmatprep.subr.mxu0 0.0
        %1054 = vmatpush2.msra.mxu0 0.0
        %1055 = vmatprep.mubr.f32.mxu0 0.0
        %1056 = vmatmul.mubr.f32.gmra.mxu0 %v860
        %v1057 = vpop.f32.mrf.mxu0
        %v1058 = vadd.f32 %v983, %v1057
        %v1059 = vpop.f32.mrf.mxu0
        %1060 = vmatprep.mubr.f32.mxu0 0.0
        %1061 = vmatmul.mubr.f32.gmra.mxu0 %v865
        %v1062 = vpop.f32.mrf.mxu0
        %v1063 = vadd.f32 %v988, %v1062
        %v1064 = vpop.f32.mrf.mxu0
        %1065 = vdwg.mxu0
        %v1066 = vld [vmem:[%s4] sm:$0x1]
        %v1068 = vlaneseq
        %v1069 = vshrl.u32 %v1068, 7
        %v1070 = vsub.s32 0, %v1069
        %v1071 = vrot.slane %v1066, %v1070
        %v1073 = vadd.f32 %v1058, %v1071
        %v1074 = vadd.f32 %v1063, %v1071
        %1075 = vst [vmem:[%s271] sm:$0xff] %v1073
        %1076 = vst [vmem:[%s271 + $0x8] sm:$0xff] %v1074
        %s1077 = sand.u32 %s141, 1
        %s1078 = scalar_lea.sflag [#allocation4], %s1077
        %s1079 = sand.u32 %s141, 1
        %s1080 = smul.addr %s1079, 16
        %s1081 = scalar_lea.vmem [#allocation8], %s1080
        // Predicated region
        $region53: #{tpu_custom_call.1} parent=39 // pred_check
          %p1082 = pneg %p151
        $region54: #{tpu_custom_call.1} parent=39 // pred_check_branch
          %1084 = sbr.rel (%p1082) target = $region56
        $region55: #{tpu_custom_call.1} parent=39 // pred_region
          %s1086 = ssub.s32 256, 256
          %1087 = vsyncadd %s1078, %s1086
          %s1088 = smul.addr %s23, 2
          %s1089 = smul.addr %s1088, 128
          %s1090 = scalar_lea.hbm %s5, %s1089
          %s1091 = sshll.u32 %s1081, 4
          %s1092 = int_to_ptr.vmem [resolvable:$true] %s1091
          %1097 = dma.vmem_to_hbm [thread:$0]  %s1092, 256, %s1090, %s1078, 128, 128, 8
        $region56: #{tpu_custom_call.1} parent=39 // pred_fallthru
          _
      $region40: #{tpu_custom_call.1} parent=5 // pred_fallthru
        _
      %p1098 = scmp.le.s32.totalorder 2, %s18
      // Predicated region
      $region57: #{tpu_custom_call.1} parent=5 // pred_check
        %p1099 = pneg %p1098
      $region58: #{tpu_custom_call.1} parent=5 // pred_check_branch
        %1101 = sbr.rel (%p1099) target = $region60
      $region59: #{tpu_custom_call.1} parent=5 // pred_region
        %s1102 = ssub.s32 %s18, 2
        // Predicated region
        $region61: #{tpu_custom_call.1} parent=59 // pred_check
          %p1103 = pneg %p157
        $region62: #{tpu_custom_call.1} parent=59 // pred_check_branch
          %1105 = sbr.rel (%p1103) target = $region64
        $region63: #{tpu_custom_call.1} parent=59 // pred_region
          %s1106 = sand.u32 %s142, 1
          %s1107 = scalar_lea.sflag [#allocation4], %s1106
          %s1108 = sand.u32 %s142, 1
          %s1109 = smul.addr %s1108, 16
          %s1110 = scalar_lea.vmem [#allocation8], %s1109
          %1111 = dma.done %s1107, 256
        $region64: #{tpu_custom_call.1} parent=59 // pred_fallthru
          _
      $region60: #{tpu_custom_call.1} parent=5 // pred_fallthru
        _
    $region6: #{tpu_custom_call.1} parent=1 // loop_footer
      %s22 = sadd.s32 1, %s18
    $region7: #{tpu_custom_call.1} parent=1 // loop_footer_branch
      %17 = sbr.rel target = $region3
    $region8: #{tpu_custom_call.1} parent=1 // loop_exit
      _
    %1112 = vsyncpa [#allocation3], 1
    %s1113 = scalar_lea.sflag [#allocation3], 1
    %1114 = vsyncpa %s1113, 1
    %1115 = vsyncpa [#allocation6], 1
    %1116 = vsyncpa [#allocation4], 1
    %s1117 = scalar_lea.sflag [#allocation4], 1
    %1118 = vsyncpa %s1117, 1

</llo_original>
